<compile_context>
chip_gen: v6e
topology: v6e:2x2x1
jax: 0.10.0
libtpu: 0.0.40
codegen_flags: <defaults>
</compile_context>

<pallas_src>
import functools

import jax
import jax.numpy as jnp
from jax.experimental import pallas as pl
from jax.experimental.pallas import tpu as pltpu

EPS = 1e-5
NEG_SLOPE = 0.01  # nn.LeakyReLU default


def _round_up(a, b):
    return (a + b - 1) // b * b


def _divisor_tile(dim, max_tile):
    """Largest multiple of 128 that divides `dim` (itself a multiple of 128)."""
    max_tile = max(max_tile // 128 * 128, 128)
    t = min(max_tile, dim)
    while dim % t:
        t -= 128
    return t


def _split_for_megacore(out_p, bn):
    """Ensure >=2 iterations on the parallel ni axis (v7x 2-TC) when possible."""
    if bn == out_p and out_p >= 256:
        t = max((out_p // 2) // 128 * 128, 128)
        while out_p % t:
            t -= 128
        return t
    return bn


# ---------------- Fused single-pass kernel (whole batch in one M tile) --------

def _fused_matmul_bn_act_kernel(x_ref, wt_ref, gamma_ref, beta_ref, o_ref,
                                acc_ref, *, n_rows, masked):
    k = pl.program_id(1)

    @pl.when(k == 0)
    def _():
        acc_ref[...] = jnp.zeros_like(acc_ref)

    acc_ref[...] += jnp.dot(
        x_ref[...], wt_ref[...], preferred_element_type=jnp.float32
    )

    @pl.when(k == pl.num_programs(1) - 1)
    def _():
        y = acc_ref[...]
        inv_n = 1.0 / n_rows
        # Full-batch stats: this ni tile's accumulator holds every batch row.
        mean = jnp.sum(y, axis=0, keepdims=True) * inv_n
        d = y - mean
        if masked:
            # Zero out padded (all-zero) rows so the two-pass variance is exact.
            row_ids = jax.lax.broadcasted_iota(jnp.int32, y.shape, 0)
            d = jnp.where(row_ids < n_rows, d, 0.0)
        var = jnp.sum(d * d, axis=0, keepdims=True) * inv_n
        scale = gamma_ref[...] * jax.lax.rsqrt(var + EPS)
        shift = beta_ref[...] - mean * scale
        z = y * scale + shift
        o_ref[...] = jnp.where(z >= 0, z, NEG_SLOPE * z).astype(o_ref.dtype)


# ---------------- Fallback pass 1: tiled matmul + per-tile feature stats ------

def _matmul_stats_kernel(x_ref, wt_ref, y_ref, sum_ref, sq_ref, acc_ref):
    k = pl.program_id(2)

    @pl.when(k == 0)
    def _():
        acc_ref[...] = jnp.zeros_like(acc_ref)

    acc_ref[...] += jnp.dot(
        x_ref[...], wt_ref[...], preferred_element_type=jnp.float32
    )

    @pl.when(k == pl.num_programs(2) - 1)
    def _():
        y = acc_ref[...]
        y_ref[...] = y.astype(y_ref.dtype)
        # Partial batch statistics; the full-batch reduction is finished in
        # tiny host-side JAX so BN stats are exact over the whole batch.
        sum_ref[0] = jnp.sum(y, axis=0, keepdims=True)
        sq_ref[0] = jnp.sum(y * y, axis=0, keepdims=True)


# ---------------- Fallback pass 2: fused BN scale/shift + LeakyReLU -----------

def _bn_act_kernel(y_ref, scale_ref, shift_ref, o_ref):
    z = y_ref[...].astype(jnp.float32) * scale_ref[...] + shift_ref[...]
    o_ref[...] = jnp.where(z >= 0, z, NEG_SLOPE * z).astype(o_ref.dtype)


# ---------------- One-time weight preparation ---------------------------------

def prepare_weight(weight, use_bf16_matmul=False):
    """Transpose PyTorch (out,in) -> (in,out), pad to 128-aligned, cast once.

    Keeps the pad + dtype cast out of the per-forward hot path (no per-call
    HBM round trips over the full weight).
    """
    out_f, in_f = weight.shape
    k_p = _round_up(in_f, 128)
    out_p = _round_up(out_f, 128)
    wt = weight.T
    if (k_p, out_p) != (in_f, out_f):
        wt = jnp.pad(wt, ((0, k_p - in_f), (0, out_p - out_f)))
    if use_bf16_matmul:
        wt = wt.astype(jnp.bfloat16)
    else:
        wt = wt.astype(jnp.float32)
    return wt


# ---------------- Forward ------------------------------------------------------

@functools.partial(
    jax.jit, static_argnames=("use_bf16_matmul", "bm_max", "bn_max", "bk_max"))
def linear_block_forward(x, wt, gamma, beta, *, use_bf16_matmul=False,
                         bm_max=512, bn_max=1024, bk_max=1024):
    """x: (N, in_f); wt: prepare_weight() output (k_p, out_p); gamma/beta: (out_f,)."""
    n, in_f = x.shape
    k_p, out_p = wt.shape
    out_f = gamma.shape[0]
    assert k_p == _round_up(in_f, 128), "wt not padded by prepare_weight()"
    assert out_p == _round_up(out_f, 128), "wt/out_features mismatch"

    cdt = jnp.bfloat16 if use_bf16_matmul else jnp.float32
    assert wt.dtype == cdt, "prepare_weight() dtype must match use_bf16_matmul"

    # ---- tile selection (lane-dense, bf16-safe sublane multiples) ------------
    n16 = _round_up(n, 16)
    bm = min(bm_max, n16)
    n_p = _round_up(n, bm)
    nm = n_p // bm
    bk = _divisor_tile(k_p, bk_max)
    bn = _divisor_tile(out_p, bn_max)
    if nm == 1:
        bn = _split_for_megacore(out_p, bn)   # >=2 parallel iters for 2-TC chips
    nn = out_p // bn
    nk = k_p // bk

    # ---- input padding (skipped entirely when already aligned) ---------------
    x_p = x if x.dtype == cdt else x.astype(cdt)
    if n_p != n or k_p != in_f:
        x_p = jnp.pad(x_p, ((0, n_p - n), (0, k_p - in_f)))
    gamma_p = gamma.astype(jnp.float32)
    beta_p = beta.astype(jnp.float32)
    if out_p != out_f:
        gamma_p = jnp.pad(gamma_p, (0, out_p - out_f))
        beta_p = jnp.pad(beta_p, (0, out_p - out_f))

    itemsize = jnp.dtype(cdt).itemsize
    flops = 2 * n_p * k_p * out_p
    # Double-buffered x/w/out tiles + f32 accumulator + small vectors.
    vmem_est = (2 * (bm * bk + bk * bn) * itemsize
                + 2 * bm * bn * 4 + bm * bn * 4 + 8 * bn * 4)
    vmem_limit = min(max(int(vmem_est * 1.5), 32 * 1024 * 1024),
                     64 * 1024 * 1024)

    # ======================= fused single-pass path ===========================
    if nm == 1:
        gamma2 = gamma_p.reshape(1, out_p)
        beta2 = beta_p.reshape(1, out_p)
        kernel = functools.partial(
            _fused_matmul_bn_act_kernel, n_rows=n, masked=(n_p != n))
        bytes_accessed = (n_p * k_p + k_p * out_p) * itemsize + n_p * out_p * 4
        out_full = pl.pallas_call(
            kernel,
            out_shape=jax.ShapeDtypeStruct((n_p, out_p), jnp.float32),
            grid_spec=pltpu.PrefetchScalarGridSpec(
                num_scalar_prefetch=0,
                grid=(nn, nk),
                in_specs=[
                    pl.BlockSpec((bm, bk), lambda ni, ki: (0, ki)),
                    pl.BlockSpec((bk, bn), lambda ni, ki: (ki, ni)),
                    pl.BlockSpec((1, bn), lambda ni, ki: (0, ni)),
                    pl.BlockSpec((1, bn), lambda ni, ki: (0, ni)),
                ],
                out_specs=pl.BlockSpec((bm, bn), lambda ni, ki: (0, ni)),
                scratch_shapes=[pltpu.VMEM((bm, bn), jnp.float32)],
            ),
            compiler_params=pltpu.CompilerParams(
                dimension_semantics=("parallel", "arbitrary"),
                vmem_limit_bytes=vmem_limit),
            cost_estimate=pl.CostEstimate(
                flops=flops, transcendentals=0, bytes_accessed=bytes_accessed),
        )(x_p, wt, gamma2, beta2)

        if n_p != n or out_p != out_f:
            out_full = out_full[:n, :out_f]
        return out_full

    # ======================= fallback two-pass path ===========================
    bytes_accessed = (n_p * k_p + k_p * out_p + n_p * out_p) * itemsize
    y_p, sums, sqs = pl.pallas_call(
        _matmul_stats_kernel,
        out_shape=(
            jax.ShapeDtypeStruct((n_p, out_p), cdt),
            jax.ShapeDtypeStruct((nm, 1, out_p), jnp.float32),
            jax.ShapeDtypeStruct((nm, 1, out_p), jnp.float32),
        ),
        grid_spec=pltpu.PrefetchScalarGridSpec(
            num_scalar_prefetch=0,
            grid=(nm, nn, nk),
            in_specs=[
                pl.BlockSpec((bm, bk), lambda mi, ni, ki: (mi, ki)),
                pl.BlockSpec((bk, bn), lambda mi, ni, ki: (ki, ni)),
            ],
            out_specs=[
                pl.BlockSpec((bm, bn), lambda mi, ni, ki: (mi, ni)),
                pl.BlockSpec((1, 1, bn), lambda mi, ni, ki: (mi, 0, ni)),
                pl.BlockSpec((1, 1, bn), lambda mi, ni, ki: (mi, 0, ni)),
            ],
            scratch_shapes=[pltpu.VMEM((bm, bn), jnp.float32)],
        ),
        compiler_params=pltpu.CompilerParams(
            dimension_semantics=("parallel", "parallel", "arbitrary"),
            vmem_limit_bytes=vmem_limit),
        cost_estimate=pl.CostEstimate(
            flops=flops, transcendentals=0, bytes_accessed=bytes_accessed),
    )(x_p, wt)

    # Finish full-batch BN statistics (tiny arrays, plain JAX).
    # One-pass E[y^2]-E[y]^2 in f32 (clamped); padded rows contribute zero.
    total = jnp.sum(sums, axis=(0, 1))
    total_sq = jnp.sum(sqs, axis=(0, 1))
    mean = total / n
    var = jnp.maximum(total_sq / n - mean * mean, 0.0)
    scale = gamma_p * jax.lax.rsqrt(var + EPS)
    shift = beta_p - mean * scale
    scale2 = scale.reshape(1, out_p)
    shift2 = shift.reshape(1, out_p)

    # ni is the slow grid axis so the tiny scale/shift blocks are fetched once
    # per ni value rather than once per grid step.
    out_full = pl.pallas_call(
        _bn_act_kernel,
        out_shape=jax.ShapeDtypeStruct((n_p, out_p), jnp.float32),
        grid=(nn, nm),
        in_specs=[
            pl.BlockSpec((bm, bn), lambda ni, mi: (mi, ni)),
            pl.BlockSpec((1, bn), lambda ni, mi: (0, ni)),
            pl.BlockSpec((1, bn), lambda ni, mi: (0, ni)),
        ],
        out_specs=pl.BlockSpec((bm, bn), lambda ni, mi: (mi, ni)),
        compiler_params=pltpu.CompilerParams(
            dimension_semantics=("parallel", "parallel"),
            vmem_limit_bytes=vmem_limit),
    )(y_p, scale2, shift2)

    if n_p != n or out_p != out_f:
        out_full = out_full[:n, :out_f]
    return out_full


# ---------------- pure-JAX reference (keeps the Linear bias) -------------------

def _reference(x, weight, bias, gamma, beta):
    y = x @ weight.T + bias
    mean = jnp.mean(y, axis=0, keepdims=True)
    var = jnp.mean((y - mean) ** 2, axis=0, keepdims=True)
    y_bn = (y - mean) / jnp.sqrt(var + EPS) * gamma + beta
    return jnp.where(y_bn >= 0, y_bn, NEG_SLOPE * y_bn)


if __name__ == "__main__":
    def run_case(n, in_f, out_f, seed, use_bf16, atol, rtol, **tile_kw):
        key = jax.random.PRNGKey(seed)
        kx, kw, kb, kg, kbe = jax.random.split(key, 5)
        x = jax.random.normal(kx, (n, in_f), dtype=jnp.float32)
        bound = 1.0 / jnp.sqrt(in_f)
        weight = jax.random.uniform(kw, (out_f, in_f), minval=-bound,
                                    maxval=bound, dtype=jnp.float32)
        bias = jax.random.uniform(kb, (out_f,), minval=-bound, maxval=bound,
                                  dtype=jnp.float32)
        gamma = 1.0 + 0.1 * jax.random.normal(kg, (out_f,), dtype=jnp.float32)
        beta = 0.1 * jax.random.normal(kbe, (out_f,), dtype=jnp.float32)

        wt = prepare_weight(weight, use_bf16_matmul=use_bf16)
        out = linear_block_forward(x, wt, gamma, beta,
                                   use_bf16_matmul=use_bf16, **tile_kw)
        out = jax.block_until_ready(out)

        ref = _reference(x, weight, bias, gamma, beta)
        assert out.shape == ref.shape, (out.shape, ref.shape)
        err = float(jnp.max(jnp.abs(out - ref)))
        assert jnp.allclose(out, ref, atol=atol, rtol=rtol), (
            f"mismatch (n={n}, in={in_f}, out={out_f}, bf16={use_bf16}): "
            f"max abs err {err}")

    # Fused single-pass path, aligned shapes (PRNGKey(0): batch=8, in=32, out=128).
    run_case(8, 32, 128, seed=0, use_bf16=False, atol=1e-4, rtol=1e-4)
    # Fused path, ragged shapes (exercises N / K / out_f padding + slicing + row mask).
    run_case(10, 20, 96, seed=1, use_bf16=False, atol=1e-4, rtol=1e-4)
    # Fused path with bn split into 2 parallel tiles (v7x megacore heuristic).
    run_case(8, 32, 256, seed=2, use_bf16=False, atol=1e-4, rtol=1e-4)
    # Multi-M-tile fallback path (pass 1 stats + pass 2 epilogue), forced via bm_max.
    run_case(40, 32, 96, seed=3, use_bf16=False, atol=1e-4, rtol=1e-4, bm_max=16)
    # bf16 MXU-input fast path (all generations), f32 accumulation + f32 epilogue.
    run_case(8, 32, 128, seed=4, use_bf16=True, atol=5e-2, rtol=5e-2)

    print("KERNEL_OK")
</pallas_src>

<mosaic_0001>
module attributes {stable_mosaic.version = 11 : i64} {
  func.func @_fused_matmul_bn_act_kernel(%arg0: i32, %arg1: i32, %arg2: memref<16x128xf32, #tpu.memory_space<vmem>>, %arg3: memref<128x128xf32, #tpu.memory_space<vmem>>, %arg4: memref<1x128xf32, #tpu.memory_space<vmem>>, %arg5: memref<1x128xf32, #tpu.memory_space<vmem>>, %arg6: memref<16x128xf32, #tpu.memory_space<vmem>>, %arg7: memref<16x128xf32, #tpu.memory_space<vmem>>) attributes {dimension_semantics = [#tpu.dimension_semantics<parallel>, #tpu.dimension_semantics<arbitrary>], iteration_bounds = array<i64: 1, 1>, scalar_prefetch = 0 : i64, scratch_operands = 1 : i64, tpu.core_type = #tpu.core_type<tc>, window_params = [{transform_indices = @transform_0, window_bounds = array<i64: 16, 128>}, {transform_indices = @transform_1, window_bounds = array<i64: 128, 128>}, {transform_indices = @transform_2, window_bounds = array<i64: 1, 128>}, {transform_indices = @transform_3, window_bounds = array<i64: 1, 128>}, {transform_indices = @transform_4, window_bounds = array<i64: 16, 128>}]} {
    %c0_i32 = arith.constant 0 : i32
    %0 = arith.cmpi eq, %arg1, %c0_i32 : i32
    %1 = arith.extui %0 : i1 to i32
    %c0_i32_0 = arith.constant 0 : i32
    %2 = arith.cmpi ne, %1, %c0_i32_0 : i32
    scf.if %2 {
      %cst_10 = arith.constant 0.000000e+00 : f32
      %12 = vector.broadcast %cst_10 : f32 to vector<16x128xf32>
      %c0_11 = arith.constant 0 : index
      %c0_12 = arith.constant 0 : index
      %13 = vector.load %arg7[%c0_11, %c0_12] : memref<16x128xf32, #tpu.memory_space<vmem>>, vector<16x128xf32>
      tpu.vector_store %arg7[%c0_11, %c0_12], %12 {strides = array<i32>} : memref<16x128xf32, #tpu.memory_space<vmem>>, vector<16x128xf32>,
    } else {
    }
    %c0 = arith.constant 0 : index
    %c0_1 = arith.constant 0 : index
    %3 = vector.load %arg7[%c0, %c0_1] : memref<16x128xf32, #tpu.memory_space<vmem>>, vector<16x128xf32>
    %c0_2 = arith.constant 0 : index
    %c0_3 = arith.constant 0 : index
    %4 = vector.load %arg2[%c0_2, %c0_3] : memref<16x128xf32, #tpu.memory_space<vmem>>, vector<16x128xf32>
    %c0_4 = arith.constant 0 : index
    %c0_5 = arith.constant 0 : index
    %5 = vector.load %arg3[%c0_4, %c0_5] : memref<128x128xf32, #tpu.memory_space<vmem>>, vector<128x128xf32>
    %cst = arith.constant dense<0.000000e+00> : vector<16x128xf32>
    %6 = tpu.matmul %4, %5, %cst {dimension_numbers = #tpu.dot_dimension_numbers<[1], [0], [0], [1], [0, 0, 1, 1], [], []>} : vector<16x128xf32>, vector<128x128xf32>, vector<16x128xf32> -> vector<16x128xf32>
    %7 = arith.addf %3, %6 : vector<16x128xf32>
    %c0_6 = arith.constant 0 : index
    %c0_7 = arith.constant 0 : index
    %8 = vector.load %arg7[%c0_6, %c0_7] : memref<16x128xf32, #tpu.memory_space<vmem>>, vector<16x128xf32>
    tpu.vector_store %arg7[%c0_6, %c0_7], %7 {strides = array<i32>} : memref<16x128xf32, #tpu.memory_space<vmem>>, vector<16x128xf32>,
    %c0_i32_8 = arith.constant 0 : i32
    %9 = arith.cmpi eq, %arg1, %c0_i32_8 : i32
    %10 = arith.extui %9 : i1 to i32
    %c0_i32_9 = arith.constant 0 : i32
    %11 = arith.cmpi ne, %10, %c0_i32_9 : i32
    scf.if %11 {
      %c0_10 = arith.constant 0 : index
      %c0_11 = arith.constant 0 : index
      %12 = vector.load %arg7[%c0_10, %c0_11] : memref<16x128xf32, #tpu.memory_space<vmem>>, vector<16x128xf32>
      %cst_12 = arith.constant dense<0.000000e+00> : vector<128xf32>
      %13 = vector.multi_reduction <add>, %12, %cst_12 [0] : vector<16x128xf32> to vector<128xf32>
      %14 = vector.shape_cast %13 : vector<128xf32> to vector<1x128xf32>
      %cst_13 = arith.constant 1.250000e-01 : f32
      %15 = vector.broadcast %cst_13 : f32 to vector<1x128xf32>
      %16 = arith.mulf %14, %15 : vector<1x128xf32>
      %17 = vector.broadcast %16 : vector<1x128xf32> to vector<16x128xf32>
      %18 = arith.subf %12, %17 : vector<16x128xf32>
      %19 = tpu.iota {dimensions = array<i32: 0>} : vector<16x128xi32>
      %c8_i32 = arith.constant 8 : i32
      %20 = vector.broadcast %c8_i32 : i32 to vector<16x128xi32>
      %21 = arith.cmpi slt, %19, %20 : vector<16x128xi32>
      %cst_14 = arith.constant 0.000000e+00 : f32
      %22 = vector.broadcast %cst_14 : f32 to vector<16x128xf32>
      %23 = arith.select %21, %18, %22 : vector<16x128xi1>, vector<16x128xf32>
      %24 = arith.mulf %23, %23 : vector<16x128xf32>
      %cst_15 = arith.constant dense<0.000000e+00> : vector<128xf32>
      %25 = vector.multi_reduction <add>, %24, %cst_15 [0] : vector<16x128xf32> to vector<128xf32>
      %26 = vector.shape_cast %25 : vector<128xf32> to vector<1x128xf32>
      %cst_16 = arith.constant 1.250000e-01 : f32
      %27 = vector.broadcast %cst_16 : f32 to vector<1x128xf32>
      %28 = arith.mulf %26, %27 : vector<1x128xf32>
      %c0_17 = arith.constant 0 : index
      %c0_18 = arith.constant 0 : index
      %29 = vector.load %arg4[%c0_17, %c0_18] : memref<1x128xf32, #tpu.memory_space<vmem>>, vector<1x128xf32>
      %cst_19 = arith.constant 9.99999974E-6 : f32
      %30 = vector.broadcast %cst_19 : f32 to vector<1x128xf32>
      %31 = arith.addf %28, %30 : vector<1x128xf32>
      %32 = math.rsqrt %31 : vector<1x128xf32>
      %33 = arith.mulf %29, %32 : vector<1x128xf32>
      %c0_20 = arith.constant 0 : index
      %c0_21 = arith.constant 0 : index
      %34 = vector.load %arg5[%c0_20, %c0_21] : memref<1x128xf32, #tpu.memory_space<vmem>>, vector<1x128xf32>
      %35 = arith.mulf %16, %33 : vector<1x128xf32>
      %36 = arith.subf %34, %35 : vector<1x128xf32>
      %37 = vector.broadcast %33 : vector<1x128xf32> to vector<16x128xf32>
      %38 = arith.mulf %12, %37 : vector<16x128xf32>
      %39 = vector.broadcast %36 : vector<1x128xf32> to vector<16x128xf32>
      %40 = arith.addf %38, %39 : vector<16x128xf32>
      %cst_22 = arith.constant 0.000000e+00 : f32
      %41 = vector.broadcast %cst_22 : f32 to vector<16x128xf32>
      %42 = arith.cmpf oge, %40, %41 : vector<16x128xf32>
      %cst_23 = arith.constant 0.00999999977 : f32
      %43 = vector.broadcast %cst_23 : f32 to vector<16x128xf32>
      %44 = arith.mulf %43, %40 : vector<16x128xf32>
      %45 = arith.select %42, %40, %44 : vector<16x128xi1>, vector<16x128xf32>
      %c0_24 = arith.constant 0 : index
      %c0_25 = arith.constant 0 : index
      %46 = vector.load %arg6[%c0_24, %c0_25] : memref<16x128xf32, #tpu.memory_space<vmem>>, vector<16x128xf32>
      tpu.vector_store %arg6[%c0_24, %c0_25], %45 {strides = array<i32>} : memref<16x128xf32, #tpu.memory_space<vmem>>, vector<16x128xf32>,
    } else {
    }
    return
  }
  func.func @transform_0(%arg0: i32, %arg1: i32) -> (i32, i32) {
    %c0_i32 = arith.constant 0 : i32
    %c0_i32_0 = arith.constant 0 : i32
    return %c0_i32, %arg1 : i32, i32
  }
  func.func @transform_1(%arg0: i32, %arg1: i32) -> (i32, i32) {
    %c0_i32 = arith.constant 0 : i32
    return %arg1, %arg0 : i32, i32
  }
  func.func @transform_2(%arg0: i32, %arg1: i32) -> (i32, i32) {
    %c0_i32 = arith.constant 0 : i32
    %c0_i32_0 = arith.constant 0 : i32
    return %c0_i32, %arg0 : i32, i32
  }
  func.func @transform_3(%arg0: i32, %arg1: i32) -> (i32, i32) {
    %c0_i32 = arith.constant 0 : i32
    %c0_i32_0 = arith.constant 0 : i32
    return %c0_i32, %arg0 : i32, i32
  }
  func.func @transform_4(%arg0: i32, %arg1: i32) -> (i32, i32) {
    %c0_i32 = arith.constant 0 : i32
    %c0_i32_0 = arith.constant 0 : i32
    return %c0_i32, %arg0 : i32, i32
  }
}

</mosaic_0001>

<llo_original>
// kernel: linear_block_forward.1
$region0: #{linear_block_forward.1}
  #allocation0 [shape = 'u32[]', space=smem, size = 0x4, offset = 0x4, fixed_abs, tag = 'smem constant byte address 0x4 - core index']
  #allocation1 [shape = 'u32[144,128]{1,0:T(1,128)}', space=vmem, size = 0x12000, scoped, tag = 'internal scratch']
  #allocation2 [shape = 'f32[16,128]{1,0:T(8,128)}', space=vmem, size = 0x2000, scoped, tag = 'scratch operand']
  %s0 = inlined_call_operand.vmem [shape: f32[16,128], index: 0, kind: input, shape index: {}]
  %s1 = inlined_call_operand.hbm [shape: f32[128,128], index: 1, kind: input, shape index: {}]
  %s2 = inlined_call_operand.vmem [shape: f32[1,128], index: 2, kind: input, shape index: {}]
  %s3 = inlined_call_operand.vmem [shape: f32[1,128], index: 3, kind: input, shape index: {}]
  %s4 = inlined_call_operand.vmem [shape: f32[16,128], index: 4, kind: output, shape index: {}]
  %s5 = sld [smem:[#allocation0]]
  $region38: #{linear_block_forward.1} parent=0
    _
  %s7 = ssub.s32 1, %s5
  %s8 = scalar_select 0, %s7, %s5
  $region1: #{linear_block_forward.1} parent=0
    #allocation3 [shape = 'u8[65536]{0}', space=vmem, size = 0x10000, scoped, tag = 'input window, operand 1, single buffered']
    #allocation4 [shape = 's32[1]{0}', space=sflag, size = 0x4, scoped, tag = 'scoped memory for linear_block_forward.1']
    %9 = vsyncpa [#allocation4], 0
    // Predicated region
    $region2: #{linear_block_forward.1} parent=1 // pred_check
      _
    $region3: #{linear_block_forward.1} parent=1 // pred_check_branch
      %11 = sbr.rel (0) target = $region5
    $region4: #{linear_block_forward.1} parent=1 // pred_region
      _
    $region5: #{linear_block_forward.1} parent=1 // pred_fallthru
      _
    // Predicated region
    $region6: #{linear_block_forward.1} parent=1 // pred_check
      _
    $region7: #{linear_block_forward.1} parent=1 // pred_check_branch
      %13 = sbr.rel (0) target = $region9
    $region8: #{linear_block_forward.1} parent=1 // pred_region
      %s15 = ssub.s32 2048, 2048
      %16 = vsyncadd [#allocation4], %s15
      %s17 = sshll.u32 [#allocation3], 4
      %s18 = int_to_ptr.vmem [resolvable:$true] %s17
      %23 = dma.hbm_to_vmem [thread:$0]  %s1, 2048, %s18, [#allocation4], 128, 128, 8
    $region9: #{linear_block_forward.1} parent=1 // pred_fallthru
      _
    // Predicated region
    $region10: #{linear_block_forward.1} parent=1 // pred_check
      _
    $region11: #{linear_block_forward.1} parent=1 // pred_check_branch
      %25 = sbr.rel (0) target = $region13
    $region12: #{linear_block_forward.1} parent=1 // pred_region
      _
    $region13: #{linear_block_forward.1} parent=1 // pred_fallthru
      _
    // Predicated region
    $region14: #{linear_block_forward.1} parent=1 // pred_check
      _
    $region15: #{linear_block_forward.1} parent=1 // pred_check_branch
      %27 = sbr.rel (0) target = $region17
    $region16: #{linear_block_forward.1} parent=1 // pred_region
      _
    $region17: #{linear_block_forward.1} parent=1 // pred_fallthru
      _
    // Predicated region
    $region18: #{linear_block_forward.1} parent=1 // pred_check
      _
    $region19: #{linear_block_forward.1} parent=1 // pred_check_branch
      %29 = sbr.rel (0) target = $region21
    $region20: #{linear_block_forward.1} parent=1 // pred_region
      %30 = dma.done [#allocation4], 2048
    $region21: #{linear_block_forward.1} parent=1 // pred_fallthru
      _
    %p31 = scmp.eq.s32.totalorder 0, 0
    // Predicated region
    $region22: #{linear_block_forward.1} parent=1 // pred_check
      %p32 = pneg %p31
    $region23: #{linear_block_forward.1} parent=1 // pred_check_branch
      %34 = sbr.rel (%p32) target = $region25
    $region24: #{linear_block_forward.1} parent=1 // pred_region
      %35 = vst [vmem:[#allocation2] sm:$0xff] 0.0
      %36 = vst [vmem:[#allocation2 + $0x8] sm:$0xff] 0.0
    $region25: #{linear_block_forward.1} parent=1 // pred_fallthru
      _
    %v37 = vld [vmem:[#allocation2] sm:$0xff]
    %v38 = vld [vmem:[#allocation2 + $0x8] sm:$0xff]
    %v39 = vld [vmem:[%s0] sm:$0xff]
    %v40 = vld [vmem:[%s0 + $0x8] sm:$0xff]
    %v41 = vld [vmem:[#allocation3] sm:$0xff]
    %v42 = vld [vmem:[#allocation3 + $0x8] sm:$0xff]
    %v43 = vld [vmem:[#allocation3 + $0x10] sm:$0xff]
    %v44 = vld [vmem:[#allocation3 + $0x18] sm:$0xff]
    %v45 = vld [vmem:[#allocation3 + $0x20] sm:$0xff]
    %v46 = vld [vmem:[#allocation3 + $0x28] sm:$0xff]
    %v47 = vld [vmem:[#allocation3 + $0x30] sm:$0xff]
    %v48 = vld [vmem:[#allocation3 + $0x38] sm:$0xff]
    %v49 = vld [vmem:[#allocation3 + $0x40] sm:$0xff]
    %v50 = vld [vmem:[#allocation3 + $0x48] sm:$0xff]
    %v51 = vld [vmem:[#allocation3 + $0x50] sm:$0xff]
    %v52 = vld [vmem:[#allocation3 + $0x58] sm:$0xff]
    %v53 = vld [vmem:[#allocation3 + $0x60] sm:$0xff]
    %v54 = vld [vmem:[#allocation3 + $0x68] sm:$0xff]
    %v55 = vld [vmem:[#allocation3 + $0x70] sm:$0xff]
    %v56 = vld [vmem:[#allocation3 + $0x78] sm:$0xff]
    %57 = vmatprep.subr.mxu0 0.0
    %58 = vmatpush1.msra.mxu0 %v56
    %59 = vmatprep.subr.mxu0 0.0
    %60 = vmatpush1.msra.mxu0 %v55
    %61 = vmatprep.subr.mxu0 0.0
    %62 = vmatpush1.msra.mxu0 %v54
    %63 = vmatprep.subr.mxu0 0.0
    %64 = vmatpush1.msra.mxu0 %v53
    %65 = vmatprep.subr.mxu0 0.0
    %66 = vmatpush1.msra.mxu0 %v52
    %67 = vmatprep.subr.mxu0 0.0
    %68 = vmatpush1.msra.mxu0 %v51
    %69 = vmatprep.subr.mxu0 0.0
    %70 = vmatpush1.msra.mxu0 %v50
    %71 = vmatprep.subr.mxu0 0.0
    %72 = vmatpush1.msra.mxu0 %v49
    %73 = vmatprep.subr.mxu0 0.0
    %74 = vmatpush1.msra.mxu0 %v48
    %75 = vmatprep.subr.mxu0 0.0
    %76 = vmatpush1.msra.mxu0 %v47
    %77 = vmatprep.subr.mxu0 0.0
    %78 = vmatpush1.msra.mxu0 %v46
    %79 = vmatprep.subr.mxu0 0.0
    %80 = vmatpush1.msra.mxu0 %v45
    %81 = vmatprep.subr.mxu0 0.0
    %82 = vmatpush1.msra.mxu0 %v44
    %83 = vmatprep.subr.mxu0 0.0
    %84 = vmatpush1.msra.mxu0 %v43
    %85 = vmatprep.subr.mxu0 0.0
    %86 = vmatpush1.msra.mxu0 %v42
    %87 = vmatprep.subr.mxu0 0.0
    %88 = vmatpush1.msra.mxu0 %v41
    %89 = vmatprep.subr.mxu0 0.0
    %90 = vmatpush2.msra.mxu0 0.0
    %91 = vmatprep.subr.mxu0 0.0
    %92 = vmatpush2.msra.mxu0 0.0
    %93 = vmatprep.subr.mxu0 0.0
    %94 = vmatpush2.msra.mxu0 0.0
    %95 = vmatprep.subr.mxu0 0.0
    %96 = vmatpush2.msra.mxu0 0.0
    %97 = vmatprep.subr.mxu0 0.0
    %98 = vmatpush2.msra.mxu0 0.0
    %99 = vmatprep.subr.mxu0 0.0
    %100 = vmatpush2.msra.mxu0 0.0
    %101 = vmatprep.subr.mxu0 0.0
    %102 = vmatpush2.msra.mxu0 0.0
    %103 = vmatprep.subr.mxu0 0.0
    %104 = vmatpush2.msra.mxu0 0.0
    %105 = vmatprep.subr.mxu0 0.0
    %106 = vmatpush2.msra.mxu0 0.0
    %107 = vmatprep.subr.mxu0 0.0
    %108 = vmatpush2.msra.mxu0 0.0
    %109 = vmatprep.subr.mxu0 0.0
    %110 = vmatpush2.msra.mxu0 0.0
    %111 = vmatprep.subr.mxu0 0.0
    %112 = vmatpush2.msra.mxu0 0.0
    %113 = vmatprep.subr.mxu0 0.0
    %114 = vmatpush2.msra.mxu0 0.0
    %115 = vmatprep.subr.mxu0 0.0
    %116 = vmatpush2.msra.mxu0 0.0
    %117 = vmatprep.subr.mxu0 0.0
    %118 = vmatpush2.msra.mxu0 0.0
    %119 = vmatprep.subr.mxu0 0.0
    %120 = vmatpush2.msra.mxu0 0.0
    %121 = vmatprep.mubr.f32.mxu0 0.0
    %122 = vmatmul.mubr.f32.gmra.mxu0 %v39
    %v123 = vpop.f32.mrf.mxu0
    %v124 = vadd.f32 0.0, %v123
    %v125 = vpop.f32.mrf.mxu0
    %126 = vmatprep.mubr.f32.mxu0 0.0
    %127 = vmatmul.mubr.f32.gmra.mxu0 %v40
    %v128 = vpop.f32.mrf.mxu0
    %v129 = vadd.f32 0.0, %v128
    %v130 = vpop.f32.mrf.mxu0
    %131 = vdwg.mxu0
    %v132 = vadd.f32 %v37, %v124
    %v133 = vadd.f32 %v38, %v129
    %134 = vst [vmem:[#allocation2] sm:$0xff] %v132
    %135 = vst [vmem:[#allocation2 + $0x8] sm:$0xff] %v133
    // Predicated region
    $region26: #{linear_block_forward.1} parent=1 // pred_check
      %p136 = pneg %p31
    $region27: #{linear_block_forward.1} parent=1 // pred_check_branch
      %138 = sbr.rel (%p136) target = $region29
    $region28: #{linear_block_forward.1} parent=1 // pred_region
      %v139 = vld [vmem:[#allocation2] sm:$0xff]
      %v140 = vld [vmem:[#allocation2 + $0x8] sm:$0xff]
      %v141 = vadd.f32 %v139, %v140
      %v142 = vrot.slane %v141, 4
      %v143 = vadd.f32 %v141, %v142
      %v144 = vrot.slane %v143, 2
      %v145 = vadd.f32 %v143, %v144
      %v146 = vrot.slane %v145, 1
      %v147 = vadd.f32 %v145, %v146
      %v148 = vmul.f32 %v147, 0.125
      %v149 = vsub.f32 %v139, %v148
      %v150 = vsub.f32 %v140, %v148
      %v151 = vlaneseq
      %v152 = vshrl.u32 %v151, 7
      %v153 = vadd.s32 %v152, 8
      %vm154 = vcmp.lt.s32.totalorder %v152, 8
      %vm155 = vcmp.lt.s32.totalorder %v153, 8
      %v156 = vsel %vm154, %v149, 0.0
      %v157 = vsel %vm155, %v150, 0.0
      %v158 = vmul.f32 %v156, %v156
      %v159 = vmul.f32 %v157, %v157
      %v160 = vadd.f32 %v158, %v159
      %v161 = vrot.slane %v160, 4
      %v162 = vadd.f32 %v160, %v161
      %v163 = vrot.slane %v162, 2
      %v164 = vadd.f32 %v162, %v163
      %v165 = vrot.slane %v164, 1
      %v166 = vadd.f32 %v164, %v165
      %v167 = vmul.f32 %v166, 0.125
      %v168 = vld [vmem:[%s2] sm:$0x1]
      %v169 = vadd.f32 %v167, 1e-05
      %v170 = vrsqrt.pop %v169
      %v171 = vmul.f32 %v168, %v170
      %v172 = vld [vmem:[%s3] sm:$0x1]
      %v173 = vmul.f32 %v148, %v171
      %v174 = vsub.f32 %v172, %v173
      %v176 = vlaneseq
      %v177 = vshrl.u32 %v176, 7
      %v178 = vsub.s32 0, %v177
      %v179 = vrot.slane %v171, %v178
      %v181 = vmul.f32 %v139, %v179
      %v182 = vmul.f32 %v140, %v179
      %v184 = vlaneseq
      %v185 = vshrl.u32 %v184, 7
      %v186 = vsub.s32 0, %v185
      %v187 = vrot.slane %v174, %v186
      %v189 = vadd.f32 %v181, %v187
      %v190 = vadd.f32 %v182, %v187
      %vm191 = vcmp.ge.f32.partialorder %v189, 0.0
      %vm192 = vcmp.ge.f32.partialorder %v190, 0.0
      %v193 = vmul.f32 %v189, 0.01
      %v194 = vmul.f32 %v190, 0.01
      %v195 = vsel %vm191, %v189, %v193
      %v196 = vsel %vm192, %v190, %v194
      %197 = vst [vmem:[%s4] sm:$0xff] %v195
      %198 = vst [vmem:[%s4 + $0x8] sm:$0xff] %v196
    $region29: #{linear_block_forward.1} parent=1 // pred_fallthru
      _
    // Predicated region
    $region30: #{linear_block_forward.1} parent=1 // pred_check
      _
    $region31: #{linear_block_forward.1} parent=1 // pred_check_branch
      %200 = sbr.rel (0) target = $region33
    $region32: #{linear_block_forward.1} parent=1 // pred_region
      _
    $region33: #{linear_block_forward.1} parent=1 // pred_fallthru
      _
    // Predicated region
    $region34: #{linear_block_forward.1} parent=1 // pred_check
      _
    $region35: #{linear_block_forward.1} parent=1 // pred_check_branch
      %202 = sbr.rel (0) target = $region37
    $region36: #{linear_block_forward.1} parent=1 // pred_region
      _
    $region37: #{linear_block_forward.1} parent=1 // pred_fallthru
      _
    %203 = vsyncpa [#allocation4], 1

</llo_original>
